<compile_context>
chip_gen: v6e
topology: v6e:2x2x1
jax: 0.10.0
libtpu: 0.0.40
codegen_flags: <defaults>
</compile_context>

<pallas_src>
import jax
import jax.numpy as jnp
from jax.experimental import pallas as pl
from jax.experimental.pallas import tpu as pltpu

_LANES = 128


def _cdiv(a, b):
    return -(-a // b)


def _round_up(a, b):
    return _cdiv(a, b) * b


def _sublane_multiple(itemsize):
    # Native sublane packing: 8 rows for 4-byte, 16 for 2-byte, 32 for 1-byte.
    return 8 * max(1, 4 // max(1, itemsize))


def _chip_config():
    """Returns (target block bytes, TensorCores sharing the parallel grid)."""
    kind = ""
    try:
        kind = jax.devices()[0].device_kind.lower()
    except Exception:  # pragma: no cover - defensive; defaults are safe
        pass
    if "v7" in kind or "7x" in kind:
        # v7x: ~3.2 TB/s HBM per TC -> 8 MiB blocks keep the per-step overhead
        # small; in+out double-buffered = 32 MiB, fits the 64 MiB physical
        # VMEM once vmem_limit_bytes is raised.  2 TensorCores per chip.
        return 8 << 20, 2
    # v5e/v6e: measured roofline plateaus around 2 MiB blocks and the working
    # set stays inside v5e's 16 MiB scoped-VMEM default.  1 TensorCore.
    return 2 << 20, 1


def _pick_tile_rows(rows, sublane, max_rows, n_cores):
    """Tile size (in 128-lane rows) for a single 'parallel' grid axis.

    The tile is a multiple of `sublane` (dtype's native packing) unless one
    block covers the full extent (full-dims exception to the (8,128) rule).
    On 2-TC chips the grid is kept >= 2 and preferably even so the parallel
    axis shards evenly; single-TC chips run a medium slab as one block.
    """
    max_rows = max(sublane, (max_rows // sublane) * sublane)
    if rows <= max_rows:
        if n_cores <= 1 or rows <= 2 * sublane:
            return rows, 1
        tr = _round_up(_cdiv(rows, 2), sublane)
        if tr >= rows:
            return rows, 1
        return tr, _cdiv(rows, tr)
    tr = max_rows
    grid = _cdiv(rows, tr)
    if n_cores > 1 and grid % 2 == 1:
        # A grid of 3 on 2 TCs is a 2-vs-1 split (~33% idle); prefer even.
        tr2 = max(sublane, _round_up(_cdiv(rows, grid + 1), sublane))
        if _cdiv(rows, tr2) % 2 == 0:
            tr, grid = tr2, _cdiv(rows, tr2)
    return tr, grid


def _swish_kernel(x_ref, o_ref):
    # f32 math on all chips (needed for bf16 accuracy on v5e, harmless else).
    # sigmoid(x) = 0.5 * (1 + tanh(x/2))  ->  swish(x) = h + h*tanh(h), h=x/2.
    # One EUP op per element instead of exp+divide keeps the kernel on the
    # HBM roofline even at v7x bandwidth.
    h = x_ref[...].astype(jnp.float32) * 0.5
    o_ref[...] = (h + h * jnp.tanh(h)).astype(o_ref.dtype)


def swish(x, *, block_rows=None, min_pallas_elements=1 << 15):
    """Elementwise swish / SiLU: x * sigmoid(x); any shape, float dtype."""
    orig_shape = x.shape
    orig_dtype = x.dtype
    n = x.size

    if n == 0:
        return x
    if n < min_pallas_elements:
        # pallas_call launch + per-step overhead dominates at this size; a
        # plain elementwise lets XLA fuse swish into neighboring ops.
        return (x * jax.nn.sigmoid(x)).astype(orig_dtype)

    itemsize = x.dtype.itemsize
    sublane = _sublane_multiple(itemsize)
    target_block_bytes, n_cores = _chip_config()
    if block_rows is None:
        block_rows = max(sublane, target_block_bytes // (_LANES * itemsize))

    flat = x.reshape(-1)
    cost = pl.CostEstimate(flops=4 * n, transcendentals=n,
                           bytes_accessed=2 * n * itemsize)

    def _compiler_params(block_elems, with_grid):
        block_nbytes = block_elems * itemsize
        # in + out, double-buffered, x1.5 headroom; floor at the v5e scoped
        # default, cap well under v7x's 64 MiB physical VMEM.
        vmem_limit = int(min(max(6 * block_nbytes + (1 << 20), 16 << 20),
                             48 << 20))
        if with_grid:
            return pltpu.CompilerParams(dimension_semantics=("parallel",),
                                        vmem_limit_bytes=vmem_limit)
        return pltpu.CompilerParams(vmem_limit_bytes=vmem_limit)

    if n % _LANES == 0:
        # Lane-dense (rows, 128) slab: full-width unmasked vector stores.
        rows = n // _LANES
        tr, _ = _pick_tile_rows(rows, sublane, block_rows, n_cores)
        grid = _cdiv(rows, tr)
        out = pl.pallas_call(
            _swish_kernel,
            out_shape=jax.ShapeDtypeStruct((rows, _LANES), orig_dtype),
            grid_spec=pltpu.PrefetchScalarGridSpec(
                num_scalar_prefetch=0,
                grid=(grid,),
                # If a trace ever shows exposed DMA between steps, add
                # pipeline_mode=pl.Buffered(3) here rather than shrinking tr.
                in_specs=[pl.BlockSpec((tr, _LANES), lambda i: (i, 0))],
                out_specs=pl.BlockSpec((tr, _LANES), lambda i: (i, 0)),
            ),
            compiler_params=_compiler_params(tr * _LANES, with_grid=True),
            cost_estimate=cost,
        )(flat.reshape(rows, _LANES))
        return out.reshape(orig_shape)

    # Non-128-multiple element counts: flat 1-D formulation.  A cdiv grid lets
    # Pallas mask the partial edge block, so there is no jnp.pad of the input
    # and no trailing slice of the output (each was a full extra HBM pass).
    chunks = _cdiv(n, _LANES)
    tc, g = _pick_tile_rows(chunks, sublane, block_rows, n_cores)
    if g <= 1:
        # Whole (small) array as a single VMEM block; no grid needed.
        out = pl.pallas_call(
            _swish_kernel,
            out_shape=jax.ShapeDtypeStruct((n,), orig_dtype),
            compiler_params=_compiler_params(chunks * _LANES, with_grid=False),
            cost_estimate=cost,
        )(flat)
        return out.reshape(orig_shape)

    block_elems = tc * _LANES  # multiple of sublane*128 -> layout friendly
    grid = _cdiv(n, block_elems)
    out = pl.pallas_call(
        _swish_kernel,
        out_shape=jax.ShapeDtypeStruct((n,), orig_dtype),
        grid_spec=pltpu.PrefetchScalarGridSpec(
            num_scalar_prefetch=0,
            grid=(grid,),
            in_specs=[pl.BlockSpec((block_elems,), lambda i: (i,))],
            out_specs=pl.BlockSpec((block_elems,), lambda i: (i,)),
        ),
        compiler_params=_compiler_params(block_elems, with_grid=True),
        cost_estimate=cost,
    )(flat)
    return out.reshape(orig_shape)


if __name__ == "__main__":
    key = jax.random.PRNGKey(0)
    keys = jax.random.split(key, 4)

    def ref(v):
        vf = v.astype(jnp.float32)
        return vf * jax.nn.sigmoid(vf)

    # 1) Small NCHW input consistent with the module's usage; force the Pallas
    #    path so the kernel itself is exercised (aligned, single block).
    x1 = jax.random.normal(keys[0], (2, 4, 16, 16), dtype=jnp.float32)
    y1 = swish(x1, min_pallas_elements=0)
    jax.block_until_ready(y1)
    assert y1.shape == x1.shape and y1.dtype == x1.dtype
    assert jnp.allclose(y1, ref(x1), atol=1e-5, rtol=1e-5)

    # 2) Larger aligned input: multi-step grid with big lane-dense blocks.
    x2 = jax.random.normal(keys[1], (8, 32, 64, 64), dtype=jnp.float32)
    y2 = swish(x2)
    jax.block_until_ready(y2)
    assert y2.shape == x2.shape and y2.dtype == x2.dtype
    assert jnp.allclose(y2, ref(x2), atol=1e-5, rtol=1e-5)

    # 3) Non-128-multiple size, single whole-array block (no pad, no slice).
    x3 = jax.random.normal(keys[2], (3, 5, 7), dtype=jnp.float32)   # 105 elems
    y3 = swish(x3, min_pallas_elements=0)
    jax.block_until_ready(y3)
    assert y3.shape == x3.shape and y3.dtype == x3.dtype
    assert jnp.allclose(y3, ref(x3), atol=1e-5, rtol=1e-5)

    # 4) Non-128-multiple size with a multi-block grid and a masked partial
    #    edge block (small block_rows exercises the edge path cheaply).
    x4 = jax.random.normal(keys[3], (7, 300), dtype=jnp.float32)    # 2100 elems
    y4 = swish(x4, block_rows=8, min_pallas_elements=0)
    jax.block_until_ready(y4)
    assert y4.shape == x4.shape and y4.dtype == x4.dtype
    assert jnp.allclose(y4, ref(x4), atol=1e-5, rtol=1e-5)

    # 5) bf16 input (16-row sublane packing path, f32 in-kernel math).
    x5 = jax.random.normal(keys[0], (4, 8, 32, 32), dtype=jnp.bfloat16)
    y5 = swish(x5, min_pallas_elements=0)
    jax.block_until_ready(y5)
    assert y5.shape == x5.shape and y5.dtype == jnp.bfloat16
    assert jnp.allclose(y5.astype(jnp.float32), ref(x5), atol=2e-2, rtol=2e-2)

    print("KERNEL_OK")
</pallas_src>

<mosaic_0001>
module attributes {stable_mosaic.version = 11 : i64} {
  func.func @_swish_kernel(%arg0: i32, %arg1: memref<16x128xf32, #tpu.memory_space<vmem>>, %arg2: memref<16x128xf32, #tpu.memory_space<vmem>>) attributes {dimension_semantics = [#tpu.dimension_semantics<parallel>], iteration_bounds = array<i64: 1>, scalar_prefetch = 0 : i64, scratch_operands = 0 : i64, tpu.core_type = #tpu.core_type<tc>, window_params = [{transform_indices = @transform_0, window_bounds = array<i64: 16, 128>}, {transform_indices = @transform_1, window_bounds = array<i64: 16, 128>}]} {
    %c0 = arith.constant 0 : index
    %c0_0 = arith.constant 0 : index
    %0 = vector.load %arg1[%c0, %c0_0] : memref<16x128xf32, #tpu.memory_space<vmem>>, vector<16x128xf32>
    %cst = arith.constant 5.000000e-01 : f32
    %1 = vector.broadcast %cst : f32 to vector<16x128xf32>
    %2 = arith.mulf %0, %1 : vector<16x128xf32>
    %3 = math.tanh %2 : vector<16x128xf32>
    %4 = arith.mulf %2, %3 : vector<16x128xf32>
    %5 = arith.addf %2, %4 : vector<16x128xf32>
    %c0_1 = arith.constant 0 : index
    %c0_2 = arith.constant 0 : index
    %6 = vector.load %arg2[%c0_1, %c0_2] : memref<16x128xf32, #tpu.memory_space<vmem>>, vector<16x128xf32>
    tpu.vector_store %arg2[%c0_1, %c0_2], %5 {strides = array<i32>} : memref<16x128xf32, #tpu.memory_space<vmem>>, vector<16x128xf32>,
    return
  }
  func.func @transform_0(%arg0: i32) -> (i32, i32) {
    %c0_i32 = arith.constant 0 : i32
    %c0_i32_0 = arith.constant 0 : i32
    return %arg0, %c0_i32 : i32, i32
  }
  func.func @transform_1(%arg0: i32) -> (i32, i32) {
    %c0_i32 = arith.constant 0 : i32
    %c0_i32_0 = arith.constant 0 : i32
    return %arg0, %c0_i32 : i32, i32
  }
}

</mosaic_0001>

<llo_original>
// kernel: tpu_custom_call.1
$region0: #{tpu_custom_call.1}
  #allocation0 [shape = 'u32[]', space=smem, size = 0x4, offset = 0x4, fixed_abs, tag = 'smem constant byte address 0x4 - core index']
  #allocation1 [shape = 'u32[144,128]{1,0:T(1,128)}', space=vmem, size = 0x12000, scoped, tag = 'internal scratch']
  %s0 = inlined_call_operand.hbm [shape: f32[16,128], index: 0, kind: input, shape index: {}]
  %s1 = inlined_call_operand.hbm [shape: f32[16,128], index: 1, kind: output, shape index: {}]
  %s2 = sld [smem:[#allocation0]]
  $region18: #{tpu_custom_call.1} parent=0
    _
  %s4 = ssub.s32 1, %s2
  %s5 = scalar_select 0, %s4, %s2
  $region1: #{tpu_custom_call.1} parent=0
    #allocation2 [shape = 'u8[8192]{0}', space=vmem, size = 0x2000, scoped, tag = 'input window, operand 0, single buffered']
    #allocation3 [shape = 's32[1]{0}', space=sflag, size = 0x4, scoped, tag = 'scoped memory for tpu_custom_call.1']
    #allocation4 [shape = 's32[1]{0}', space=sflag, size = 0x4, scoped, tag = 'scoped memory for tpu_custom_call.1']
    #allocation5 [shape = 'u8[8192]{0}', space=vmem, size = 0x2000, scoped, tag = 'output window, operand 0, single buffered']
    %6 = vsyncpa [#allocation3], 0
    %7 = vsyncpa [#allocation4], 0
    // Predicated region
    $region2: #{tpu_custom_call.1} parent=1 // pred_check
      _
    $region3: #{tpu_custom_call.1} parent=1 // pred_check_branch
      %9 = sbr.rel (0) target = $region5
    $region4: #{tpu_custom_call.1} parent=1 // pred_region
      %s11 = ssub.s32 256, 256
      %12 = vsyncadd [#allocation3], %s11
      %s13 = sshll.u32 [#allocation2], 4
      %s14 = int_to_ptr.vmem [resolvable:$true] %s13
      %19 = dma.hbm_to_vmem [thread:$0]  %s0, 256, %s14, [#allocation3], 128, 128, 8
    $region5: #{tpu_custom_call.1} parent=1 // pred_fallthru
      _
    // Predicated region
    $region6: #{tpu_custom_call.1} parent=1 // pred_check
      _
    $region7: #{tpu_custom_call.1} parent=1 // pred_check_branch
      %21 = sbr.rel (0) target = $region9
    $region8: #{tpu_custom_call.1} parent=1 // pred_region
      %22 = dma.done [#allocation3], 256
    $region9: #{tpu_custom_call.1} parent=1 // pred_fallthru
      _
    %v23 = vld [vmem:[#allocation2] sm:$0xff]
    %v24 = vld [vmem:[#allocation2 + $0x8] sm:$0xff]
    %v25 = vmul.f32 %v23, 0.5
    %v26 = vmul.f32 %v24, 0.5
    %v27 = vtanh.pop %v25
    %v28 = vtanh.pop %v26
    %v29 = vmul.f32 %v25, %v27
    %v30 = vmul.f32 %v26, %v28
    %v31 = vadd.f32 %v25, %v29
    %v32 = vadd.f32 %v26, %v30
    %33 = vst [vmem:[#allocation5] sm:$0xff] %v31
    %34 = vst [vmem:[#allocation5 + $0x8] sm:$0xff] %v32
    // Predicated region
    $region10: #{tpu_custom_call.1} parent=1 // pred_check
      _
    $region11: #{tpu_custom_call.1} parent=1 // pred_check_branch
      %36 = sbr.rel (0) target = $region13
    $region12: #{tpu_custom_call.1} parent=1 // pred_region
      %s38 = ssub.s32 256, 256
      %39 = vsyncadd [#allocation4], %s38
      %s40 = sshll.u32 [#allocation5], 4
      %s41 = int_to_ptr.vmem [resolvable:$true] %s40
      %46 = dma.vmem_to_hbm [thread:$0]  %s41, 256, %s1, [#allocation4], 128, 128, 8
    $region13: #{tpu_custom_call.1} parent=1 // pred_fallthru
      _
    // Predicated region
    $region14: #{tpu_custom_call.1} parent=1 // pred_check
      _
    $region15: #{tpu_custom_call.1} parent=1 // pred_check_branch
      %48 = sbr.rel (0) target = $region17
    $region16: #{tpu_custom_call.1} parent=1 // pred_region
      %49 = dma.done [#allocation4], 256
    $region17: #{tpu_custom_call.1} parent=1 // pred_fallthru
      _
    %50 = vsyncpa [#allocation3], 1
    %51 = vsyncpa [#allocation4], 1

</llo_original>
